<compile_context>
chip_gen: v6e
topology: v6e:2x2x1
jax: 0.10.0
libtpu: 0.0.40
codegen_flags: <defaults>
</compile_context>

<pallas_src>
import functools
import math

import jax
import jax.numpy as jnp
from jax.experimental import pallas as pl
from jax.experimental.pallas import tpu as pltpu


def _layer_norm(x, gamma, beta, eps=1e-5):
    """PyTorch nn.LayerNorm semantics (biased variance, eps inside sqrt)."""
    mu = jnp.mean(x, axis=-1, keepdims=True)
    xc = x - mu
    var = jnp.mean(xc * xc, axis=-1, keepdims=True)
    return xc * jax.lax.rsqrt(var + eps) * gamma + beta


def _gelu_exact(x):
    """Exact (erf-based) GELU matching PyTorch F.gelu default.

    lax.erf has no Mosaic lowering, so erf uses the Abramowitz & Stegun 7.1.26
    polynomial (|abs err| <= 1.5e-7) with only exp / mul / add / where.
    The divide stays exact (approx reciprocal would cost ~2^-12 accuracy).
    """
    inv_sqrt2 = 0.7071067811865476
    z = x * inv_sqrt2
    az = jnp.abs(z)
    t = 1.0 / (1.0 + 0.3275911 * az)
    poly = ((((1.061405429 * t - 1.453152027) * t + 1.421413741) * t
             - 0.284496736) * t + 0.254829592) * t
    erf_az = 1.0 - poly * jnp.exp(-az * az)
    erf_z = jnp.where(z < 0.0, -erf_az, erf_az)
    return 0.5 * x * (1.0 + erf_z)


def _conv_block_kernel(x_ref, p_ref, wstk_ref, w1_ref, w2_ref, o_ref, stk_ref,
                       *, T, kW):
    """One invocation processes all bsz*T token rows (N = bsz*T).

    x_ref    : (N, D)       flattened tokens
    p_ref    : (8, H)       packed params: rows 0..5 = g1,b1,g2,b2,bconv,bm2 (D-wide,
                            zero-padded to H), row 6 = bm1 (H-wide), row 7 = zeros
    wstk_ref : (kW*D, D)    stacked causal taps: wstk[s*D+c, o] = W[o, c, kW-1-s]
    w1_ref   : (D, H)       MLP hidden weight
    w2_ref   : (H, D)       MLP out weight
    o_ref    : (N, D)
    stk_ref  : (N, kW*D)    VMEM scratch holding the shifted-stacked operand
    """
    N, D = x_ref.shape

    g1 = p_ref[0:1, :D]
    b1 = p_ref[1:2, :D]
    g2 = p_ref[2:3, :D]
    b2 = p_ref[3:4, :D]
    bconv = p_ref[4:5, :D]
    bm2 = p_ref[5:6, :D]
    bm1 = p_ref[6:7, :]

    x = x_ref[...].astype(jnp.float32)

    # ---- norm1 ----
    xn = _layer_norm(x, g1, b1)

    # ---- causal shift-stack (roll on the sublane axis + token-index mask) ----
    # stk[:, s*D:(s+1)*D] = xn delayed by s token rows, zero history, no cross-batch
    # leak (token index within each batch is n % T since batches are row-contiguous).
    stk_ref[:, 0:D] = xn
    if kW > 1:
        t_idx = jax.lax.broadcasted_iota(jnp.int32, (N, D), 0) % T
        for s in range(1, kW):
            rolled = pltpu.roll(xn, shift=s, axis=0)          # row n <- row n-s (wraps)
            stk_ref[:, s * D:(s + 1) * D] = jnp.where(t_idx >= s, rolled, 0.0)

    # ---- causal Conv1d as ONE matmul with contraction dim kW*D, then ReLU ----
    z = jnp.dot(stk_ref[...], wstk_ref[...],
                preferred_element_type=jnp.float32) + bconv
    z = jnp.maximum(z, 0.0)

    # ---- residual MLP on norm2(z) ----
    # TODO(synk): MLP dropout is identity here (eval mode / p = 0.0).
    zn = _layer_norm(z, g2, b2)
    h = jnp.dot(zn, w1_ref[...], preferred_element_type=jnp.float32) + bm1
    h = _gelu_exact(h)
    m = jnp.dot(h, w2_ref[...], preferred_element_type=jnp.float32) + bm2

    o_ref[...] = (z + m).astype(o_ref.dtype)


def conv_block(x, g1, b1, g2, b2, wconv, bconv, w1, bm1, w2, bm2, *, kW):
    """wconv is in PyTorch Conv1d layout (out_ch, in_ch, kW)."""
    bsz, T, D = x.shape
    assert kW <= T, "kernel assumes kW <= T"
    N = bsz * T
    H = w1.shape[1]
    assert H >= D

    # Flatten tokens (free, same row-major bytes) -> one grid step, bigger matmuls.
    x2 = x.reshape(N, D)

    # Stacked causal tap matrix: wstk[s*D + c, o] = wconv[o, c, kW-1-s].
    wstk = jnp.transpose(wconv[:, :, ::-1], (2, 1, 0)).reshape(kW * D, D)

    # Pack the seven small parameter vectors into one (8, H) tile.
    def _pad_d(v):
        return jnp.pad(v.astype(jnp.float32), ((0, 0), (0, H - D)))
    params = jnp.concatenate(
        [_pad_d(g1), _pad_d(b1), _pad_d(g2), _pad_d(b2), _pad_d(bconv), _pad_d(bm2),
         bm1.astype(jnp.float32), jnp.zeros((1, H), jnp.float32)], axis=0)

    kernel = functools.partial(_conv_block_kernel, T=T, kW=kW)

    flops = (2 * N * (kW * D) * D          # fused conv matmul
             + 4 * N * D * H               # MLP matmuls
             + 20 * N * D + 14 * N * H)    # LN / ReLU / GELU poly / residual
    transcendentals = 2 * N * H + 2 * N    # gelu exp + gelu divide + two rsqrt per row
    bytes_accessed = 4 * (2 * N * D + kW * D * D + 2 * D * H + 8 * H)

    out2 = pl.pallas_call(
        kernel,
        out_shape=jax.ShapeDtypeStruct((N, D), x.dtype),
        grid_spec=pltpu.PrefetchScalarGridSpec(
            num_scalar_prefetch=0,
            grid=(1,),                                         # single step: no per-step overhead
            in_specs=[
                pl.BlockSpec((N, D), lambda i: (0, 0)),        # x (all tokens)
                pl.BlockSpec((8, H), lambda i: (0, 0)),        # packed params
                pl.BlockSpec((kW * D, D), lambda i: (0, 0)),   # stacked conv taps
                pl.BlockSpec((D, H), lambda i: (0, 0)),        # MLP hidden weight
                pl.BlockSpec((H, D), lambda i: (0, 0)),        # MLP out weight
            ],
            out_specs=pl.BlockSpec((N, D), lambda i: (0, 0)),
            scratch_shapes=[pltpu.VMEM((N, kW * D), jnp.float32)],
        ),
        compiler_params=pltpu.CompilerParams(
            dimension_semantics=("arbitrary",)),
        cost_estimate=pl.CostEstimate(
            flops=flops,
            transcendentals=transcendentals,
            bytes_accessed=bytes_accessed),
    )(x2, params, wstk, w1, w2)
    return out2.reshape(bsz, T, D)


def _reference(x, g1, b1, g2, b2, wconv, bconv, w1, bm1, w2, bm2, kW):
    """Pure-JAX reproduction of the PyTorch ConvBlock forward (dropout = identity)."""
    eps = 1e-5

    def ln(v, g, b):
        mu = v.mean(-1, keepdims=True)
        var = ((v - mu) ** 2).mean(-1, keepdims=True)
        return (v - mu) / jnp.sqrt(var + eps) * g[0] + b[0]

    bsz, T, D = x.shape
    xn = ln(x, g1, b1)
    # Conv1d with padding=kW-1 then crop of the last kW-1 outputs == left-pad only.
    xp = jnp.pad(xn, ((0, 0), (kW - 1, 0), (0, 0)))
    z = jnp.broadcast_to(bconv[0], (bsz, T, D)).astype(jnp.float32)
    for j in range(kW):
        z = z + jnp.einsum('btc,oc->bto', xp[:, j:j + T, :], wconv[:, :, j])
    z = jax.nn.relu(z)
    zn = ln(z, g2, b2)
    h = jax.nn.gelu(zn @ w1 + bm1[0], approximate=False)
    m = h @ w2 + bm2[0]
    return z + m


if __name__ == "__main__":
    # Small config implied by the module: bsz=2, T=8, mod_dim=32, kW=3 (hidden 4*D=128).
    bsz, T, D, kW = 2, 8, 32, 3
    H = 4 * D
    key = jax.random.PRNGKey(0)
    ks = jax.random.split(key, 12)

    x = jax.random.normal(ks[0], (bsz, T, D), jnp.float32)

    # LayerNorm affine params (perturbed so the test is meaningful).
    g1 = 1.0 + 0.1 * jax.random.normal(ks[1], (1, D), jnp.float32)
    b1 = 0.1 * jax.random.normal(ks[2], (1, D), jnp.float32)
    g2 = 1.0 + 0.1 * jax.random.normal(ks[3], (1, D), jnp.float32)
    b2 = 0.1 * jax.random.normal(ks[4], (1, D), jnp.float32)

    # Conv1d init: U(-1/sqrt(in_ch*kW), +...), PyTorch layout (out_ch, in_ch, kW).
    bc = 1.0 / math.sqrt(D * kW)
    wconv = jax.random.uniform(ks[5], (D, D, kW), jnp.float32, -bc, bc)
    bconv = jax.random.uniform(ks[6], (1, D), jnp.float32, -bc, bc)

    # MLP Linear init: U(-1/sqrt(fan_in), +...), weights stored (in, out).
    b1w = 1.0 / math.sqrt(D)
    w1 = jax.random.uniform(ks[7], (D, H), jnp.float32, -b1w, b1w)
    bm1 = jax.random.uniform(ks[8], (1, H), jnp.float32, -b1w, b1w)
    b2w = 1.0 / math.sqrt(H)
    w2 = jax.random.uniform(ks[9], (H, D), jnp.float32, -b2w, b2w)
    bm2 = jax.random.uniform(ks[10], (1, D), jnp.float32, -b2w, b2w)

    out = conv_block(x, g1, b1, g2, b2, wconv, bconv, w1, bm1, w2, bm2, kW=kW)
    out = jax.block_until_ready(out)

    ref = _reference(x, g1, b1, g2, b2, wconv, bconv, w1, bm1, w2, bm2, kW)
    assert out.shape == (bsz, T, D)
    assert jnp.allclose(out, ref, atol=1e-4, rtol=1e-4), (
        f"max abs err = {jnp.max(jnp.abs(out - ref))}")

    print("KERNEL_OK")
</pallas_src>

<mosaic_0001>
module attributes {stable_mosaic.version = 11 : i64} {
  func.func @_conv_block_kernel(%arg0: i32, %arg1: memref<16x32xf32, #tpu.memory_space<vmem>>, %arg2: memref<8x128xf32, #tpu.memory_space<vmem>>, %arg3: memref<96x32xf32, #tpu.memory_space<vmem>>, %arg4: memref<32x128xf32, #tpu.memory_space<vmem>>, %arg5: memref<128x32xf32, #tpu.memory_space<vmem>>, %arg6: memref<16x32xf32, #tpu.memory_space<vmem>>, %arg7: memref<16x96xf32, #tpu.memory_space<vmem>>) attributes {dimension_semantics = [#tpu.dimension_semantics<arbitrary>], iteration_bounds = array<i64: 1>, scalar_prefetch = 0 : i64, scratch_operands = 1 : i64, tpu.core_type = #tpu.core_type<tc>, window_params = [{pipeline_mode = #tpu.pipeline_mode<synchronous>, transform_indices = @transform_0, window_bounds = array<i64: 16, 32>}, {pipeline_mode = #tpu.pipeline_mode<synchronous>, transform_indices = @transform_1, window_bounds = array<i64: 8, 128>}, {pipeline_mode = #tpu.pipeline_mode<synchronous>, transform_indices = @transform_2, window_bounds = array<i64: 96, 32>}, {pipeline_mode = #tpu.pipeline_mode<synchronous>, transform_indices = @transform_3, window_bounds = array<i64: 32, 128>}, {pipeline_mode = #tpu.pipeline_mode<synchronous>, transform_indices = @transform_4, window_bounds = array<i64: 128, 32>}, {pipeline_mode = #tpu.pipeline_mode<synchronous>, transform_indices = @transform_5, window_bounds = array<i64: 16, 32>}]} {
    %c0 = arith.constant 0 : index
    %c0_0 = arith.constant 0 : index
    %0 = vector.load %arg2[%c0, %c0_0] : memref<8x128xf32, #tpu.memory_space<vmem>>, vector<1x32xf32>
    %c1 = arith.constant 1 : index
    %c0_1 = arith.constant 0 : index
    %1 = vector.load %arg2[%c1, %c0_1] : memref<8x128xf32, #tpu.memory_space<vmem>>, vector<1x32xf32>
    %c2 = arith.constant 2 : index
    %c0_2 = arith.constant 0 : index
    %2 = vector.load %arg2[%c2, %c0_2] : memref<8x128xf32, #tpu.memory_space<vmem>>, vector<1x32xf32>
    %c3 = arith.constant 3 : index
    %c0_3 = arith.constant 0 : index
    %3 = vector.load %arg2[%c3, %c0_3] : memref<8x128xf32, #tpu.memory_space<vmem>>, vector<1x32xf32>
    %c4 = arith.constant 4 : index
    %c0_4 = arith.constant 0 : index
    %4 = vector.load %arg2[%c4, %c0_4] : memref<8x128xf32, #tpu.memory_space<vmem>>, vector<1x32xf32>
    %c5 = arith.constant 5 : index
    %c0_5 = arith.constant 0 : index
    %5 = vector.load %arg2[%c5, %c0_5] : memref<8x128xf32, #tpu.memory_space<vmem>>, vector<1x32xf32>
    %c6 = arith.constant 6 : index
    %c0_6 = arith.constant 0 : index
    %6 = vector.load %arg2[%c6, %c0_6] : memref<8x128xf32, #tpu.memory_space<vmem>>, vector<1x128xf32>
    %c0_7 = arith.constant 0 : index
    %c0_8 = arith.constant 0 : index
    %7 = vector.load %arg1[%c0_7, %c0_8] : memref<16x32xf32, #tpu.memory_space<vmem>>, vector<16x32xf32>
    %cst = arith.constant dense<0.000000e+00> : vector<16xf32>
    %8 = vector.multi_reduction <add>, %7, %cst [1] : vector<16x32xf32> to vector<16xf32>
    %9 = vector.shape_cast %8 : vector<16xf32> to vector<16x1xf32>
    %cst_9 = arith.constant 3.200000e+01 : f32
    %10 = vector.broadcast %cst_9 : f32 to vector<16x1xf32>
    %11 = arith.divf %9, %10 : vector<16x1xf32>
    %12 = vector.broadcast %11 : vector<16x1xf32> to vector<16x32xf32>
    %13 = arith.subf %7, %12 : vector<16x32xf32>
    %14 = arith.mulf %13, %13 : vector<16x32xf32>
    %cst_10 = arith.constant dense<0.000000e+00> : vector<16xf32>
    %15 = vector.multi_reduction <add>, %14, %cst_10 [1] : vector<16x32xf32> to vector<16xf32>
    %16 = vector.shape_cast %15 : vector<16xf32> to vector<16x1xf32>
    %cst_11 = arith.constant 3.200000e+01 : f32
    %17 = vector.broadcast %cst_11 : f32 to vector<16x1xf32>
    %18 = arith.divf %16, %17 : vector<16x1xf32>
    %cst_12 = arith.constant 9.99999974E-6 : f32
    %19 = vector.broadcast %cst_12 : f32 to vector<16x1xf32>
    %20 = arith.addf %18, %19 : vector<16x1xf32>
    %21 = math.rsqrt %20 : vector<16x1xf32>
    %22 = vector.broadcast %21 : vector<16x1xf32> to vector<16x32xf32>
    %23 = arith.mulf %13, %22 : vector<16x32xf32>
    %24 = vector.broadcast %0 : vector<1x32xf32> to vector<16x32xf32>
    %25 = arith.mulf %23, %24 : vector<16x32xf32>
    %26 = vector.broadcast %1 : vector<1x32xf32> to vector<16x32xf32>
    %27 = arith.addf %25, %26 : vector<16x32xf32>
    %c0_13 = arith.constant 0 : index
    %c0_14 = arith.constant 0 : index
    %28 = vector.load %arg7[%c0_13, %c0_14] : memref<16x96xf32, #tpu.memory_space<vmem>>, vector<16x32xf32>
    tpu.vector_store %arg7[%c0_13, %c0_14], %27 {strides = array<i32>} : memref<16x96xf32, #tpu.memory_space<vmem>>, vector<16x32xf32>,
    %29 = tpu.iota {dimensions = array<i32: 0>} : vector<16x32xi32>
    %c8_i32 = arith.constant 8 : i32
    %c0_i32 = arith.constant 0 : i32
    %30 = arith.cmpi eq, %c8_i32, %c0_i32 : i32
    %c1_i32 = arith.constant 1 : i32
    %31 = arith.select %30, %c1_i32, %c8_i32 : i32
    %32 = vector.broadcast %31 : i32 to vector<16x32xi32>
    %33 = arith.remsi %29, %32 : vector<16x32xi32>
    %c0_i32_15 = arith.constant 0 : i32
    %34 = vector.broadcast %c0_i32_15 : i32 to vector<16x32xi32>
    %35 = arith.cmpi ne, %33, %34 : vector<16x32xi32>
    %c0_i32_16 = arith.constant 0 : i32
    %36 = vector.broadcast %c0_i32_16 : i32 to vector<16x32xi32>
    %37 = arith.cmpi slt, %33, %36 : vector<16x32xi32>
    %c0_i32_17 = arith.constant 0 : i32
    %38 = arith.cmpi slt, %31, %c0_i32_17 : i32
    %39 = vector.broadcast %38 : i1 to vector<16x32xi1>
    %40 = vector.broadcast %39 : vector<16x32xi1> to vector<16x32xi1>
    %41 = arith.xori %37, %40 : vector<16x32xi1>
    %42 = arith.andi %41, %35 : vector<16x32xi1>
    %43 = vector.broadcast %31 : i32 to vector<16x32xi32>
    %44 = arith.addi %33, %43 : vector<16x32xi32>
    %45 = arith.select %42, %44, %33 : vector<16x32xi1>, vector<16x32xi32>
    %c1_i32_18 = arith.constant 1 : i32
    %46 = tpu.dynamic_rotate %27 by %c1_i32_18 dim 0 : vector<16x32xf32>, i32 -> vector<16x32xf32>
    %c1_i32_19 = arith.constant 1 : i32
    %47 = vector.broadcast %c1_i32_19 : i32 to vector<16x32xi32>
    %48 = arith.cmpi sge, %45, %47 : vector<16x32xi32>
    %cst_20 = arith.constant 0.000000e+00 : f32
    %49 = vector.broadcast %cst_20 : f32 to vector<16x32xf32>
    %50 = arith.select %48, %46, %49 : vector<16x32xi1>, vector<16x32xf32>
    %c0_21 = arith.constant 0 : index
    %c32 = arith.constant 32 : index
    %51 = vector.load %arg7[%c0_21, %c32] : memref<16x96xf32, #tpu.memory_space<vmem>>, vector<16x32xf32>
    tpu.vector_store %arg7[%c0_21, %c32], %50 {strides = array<i32>} : memref<16x96xf32, #tpu.memory_space<vmem>>, vector<16x32xf32>,
    %c2_i32 = arith.constant 2 : i32
    %52 = tpu.dynamic_rotate %27 by %c2_i32 dim 0 : vector<16x32xf32>, i32 -> vector<16x32xf32>
    %c2_i32_22 = arith.constant 2 : i32
    %53 = vector.broadcast %c2_i32_22 : i32 to vector<16x32xi32>
    %54 = arith.cmpi sge, %45, %53 : vector<16x32xi32>
    %cst_23 = arith.constant 0.000000e+00 : f32
    %55 = vector.broadcast %cst_23 : f32 to vector<16x32xf32>
    %56 = arith.select %54, %52, %55 : vector<16x32xi1>, vector<16x32xf32>
    %c0_24 = arith.constant 0 : index
    %c64 = arith.constant 64 : index
    %57 = vector.load %arg7[%c0_24, %c64] : memref<16x96xf32, #tpu.memory_space<vmem>>, vector<16x32xf32>
    tpu.vector_store %arg7[%c0_24, %c64], %56 {strides = array<i32>} : memref<16x96xf32, #tpu.memory_space<vmem>>, vector<16x32xf32>,
    %c0_25 = arith.constant 0 : index
    %c0_26 = arith.constant 0 : index
    %58 = vector.load %arg7[%c0_25, %c0_26] : memref<16x96xf32, #tpu.memory_space<vmem>>, vector<16x96xf32>
    %c0_27 = arith.constant 0 : index
    %c0_28 = arith.constant 0 : index
    %59 = vector.load %arg3[%c0_27, %c0_28] : memref<96x32xf32, #tpu.memory_space<vmem>>, vector<96x32xf32>
    %cst_29 = arith.constant dense<0.000000e+00> : vector<16x32xf32>
    %60 = tpu.matmul %58, %59, %cst_29 {dimension_numbers = #tpu.dot_dimension_numbers<[1], [0], [0], [1], [0, 0, 1, 1], [], []>} : vector<16x96xf32>, vector<96x32xf32>, vector<16x32xf32> -> vector<16x32xf32>
    %61 = vector.broadcast %4 : vector<1x32xf32> to vector<16x32xf32>
    %62 = arith.addf %60, %61 : vector<16x32xf32>
    %cst_30 = arith.constant 0.000000e+00 : f32
    %63 = vector.broadcast %cst_30 : f32 to vector<16x32xf32>
    %64 = arith.maximumf %62, %63 : vector<16x32xf32>
    %cst_31 = arith.constant dense<0.000000e+00> : vector<16xf32>
    %65 = vector.multi_reduction <add>, %64, %cst_31 [1] : vector<16x32xf32> to vector<16xf32>
    %66 = vector.shape_cast %65 : vector<16xf32> to vector<16x1xf32>
    %cst_32 = arith.constant 3.200000e+01 : f32
    %67 = vector.broadcast %cst_32 : f32 to vector<16x1xf32>
    %68 = arith.divf %66, %67 : vector<16x1xf32>
    %69 = vector.broadcast %68 : vector<16x1xf32> to vector<16x32xf32>
    %70 = arith.subf %64, %69 : vector<16x32xf32>
    %71 = arith.mulf %70, %70 : vector<16x32xf32>
    %cst_33 = arith.constant dense<0.000000e+00> : vector<16xf32>
    %72 = vector.multi_reduction <add>, %71, %cst_33 [1] : vector<16x32xf32> to vector<16xf32>
    %73 = vector.shape_cast %72 : vector<16xf32> to vector<16x1xf32>
    %cst_34 = arith.constant 3.200000e+01 : f32
    %74 = vector.broadcast %cst_34 : f32 to vector<16x1xf32>
    %75 = arith.divf %73, %74 : vector<16x1xf32>
    %cst_35 = arith.constant 9.99999974E-6 : f32
    %76 = vector.broadcast %cst_35 : f32 to vector<16x1xf32>
    %77 = arith.addf %75, %76 : vector<16x1xf32>
    %78 = math.rsqrt %77 : vector<16x1xf32>
    %79 = vector.broadcast %78 : vector<16x1xf32> to vector<16x32xf32>
    %80 = arith.mulf %70, %79 : vector<16x32xf32>
    %81 = vector.broadcast %2 : vector<1x32xf32> to vector<16x32xf32>
    %82 = arith.mulf %80, %81 : vector<16x32xf32>
    %83 = vector.broadcast %3 : vector<1x32xf32> to vector<16x32xf32>
    %84 = arith.addf %82, %83 : vector<16x32xf32>
    %c0_36 = arith.constant 0 : index
    %c0_37 = arith.constant 0 : index
    %85 = vector.load %arg4[%c0_36, %c0_37] : memref<32x128xf32, #tpu.memory_space<vmem>>, vector<32x128xf32>
    %cst_38 = arith.constant dense<0.000000e+00> : vector<16x128xf32>
    %86 = tpu.matmul %84, %85, %cst_38 {dimension_numbers = #tpu.dot_dimension_numbers<[1], [0], [0], [1], [0, 0, 1, 1], [], []>} : vector<16x32xf32>, vector<32x128xf32>, vector<16x128xf32> -> vector<16x128xf32>
    %87 = vector.broadcast %6 : vector<1x128xf32> to vector<16x128xf32>
    %88 = arith.addf %86, %87 : vector<16x128xf32>
    %cst_39 = arith.constant 0.707106769 : f32
    %89 = vector.broadcast %cst_39 : f32 to vector<16x128xf32>
    %90 = arith.mulf %88, %89 : vector<16x128xf32>
    %91 = math.absf %90 : vector<16x128xf32>
    %cst_40 = arith.constant 0.327591091 : f32
    %92 = vector.broadcast %cst_40 : f32 to vector<16x128xf32>
    %93 = arith.mulf %92, %91 : vector<16x128xf32>
    %cst_41 = arith.constant 1.000000e+00 : f32
    %94 = vector.broadcast %cst_41 : f32 to vector<16x128xf32>
    %95 = arith.addf %94, %93 : vector<16x128xf32>
    %cst_42 = arith.constant 1.000000e+00 : f32
    %96 = vector.broadcast %cst_42 : f32 to vector<16x128xf32>
    %97 = arith.divf %96, %95 : vector<16x128xf32>
    %cst_43 = arith.constant 1.06140542 : f32
    %98 = vector.broadcast %cst_43 : f32 to vector<16x128xf32>
    %99 = arith.mulf %98, %97 : vector<16x128xf32>
    %cst_44 = arith.constant 1.45315206 : f32
    %100 = vector.broadcast %cst_44 : f32 to vector<16x128xf32>
    %101 = arith.subf %99, %100 : vector<16x128xf32>
    %102 = arith.mulf %101, %97 : vector<16x128xf32>
    %cst_45 = arith.constant 1.42141378 : f32
    %103 = vector.broadcast %cst_45 : f32 to vector<16x128xf32>
    %104 = arith.addf %102, %103 : vector<16x128xf32>
    %105 = arith.mulf %104, %97 : vector<16x128xf32>
    %cst_46 = arith.constant 0.284496725 : f32
    %106 = vector.broadcast %cst_46 : f32 to vector<16x128xf32>
    %107 = arith.subf %105, %106 : vector<16x128xf32>
    %108 = arith.mulf %107, %97 : vector<16x128xf32>
    %cst_47 = arith.constant 0.254829586 : f32
    %109 = vector.broadcast %cst_47 : f32 to vector<16x128xf32>
    %110 = arith.addf %108, %109 : vector<16x128xf32>
    %111 = arith.mulf %110, %97 : vector<16x128xf32>
    %cst_48 = arith.constant 0.000000e+00 : f32
    %112 = vector.broadcast %cst_48 : f32 to vector<16x128xf32>
    %113 = arith.subf %112, %91 : vector<16x128xf32>
    %114 = arith.mulf %113, %91 : vector<16x128xf32>
    %115 = math.exp %114 : vector<16x128xf32>
    %116 = arith.mulf %111, %115 : vector<16x128xf32>
    %cst_49 = arith.constant 1.000000e+00 : f32
    %117 = vector.broadcast %cst_49 : f32 to vector<16x128xf32>
    %118 = arith.subf %117, %116 : vector<16x128xf32>
    %cst_50 = arith.constant 0.000000e+00 : f32
    %119 = vector.broadcast %cst_50 : f32 to vector<16x128xf32>
    %120 = arith.cmpf olt, %90, %119 : vector<16x128xf32>
    %cst_51 = arith.constant 0.000000e+00 : f32
    %121 = vector.broadcast %cst_51 : f32 to vector<16x128xf32>
    %122 = arith.subf %121, %118 : vector<16x128xf32>
    %123 = arith.select %120, %122, %118 : vector<16x128xi1>, vector<16x128xf32>
    %cst_52 = arith.constant 5.000000e-01 : f32
    %124 = vector.broadcast %cst_52 : f32 to vector<16x128xf32>
    %125 = arith.mulf %124, %88 : vector<16x128xf32>
    %cst_53 = arith.constant 1.000000e+00 : f32
    %126 = vector.broadcast %cst_53 : f32 to vector<16x128xf32>
    %127 = arith.addf %126, %123 : vector<16x128xf32>
    %128 = arith.mulf %125, %127 : vector<16x128xf32>
    %c0_54 = arith.constant 0 : index
    %c0_55 = arith.constant 0 : index
    %129 = vector.load %arg5[%c0_54, %c0_55] : memref<128x32xf32, #tpu.memory_space<vmem>>, vector<128x32xf32>
    %cst_56 = arith.constant dense<0.000000e+00> : vector<16x32xf32>
    %130 = tpu.matmul %128, %129, %cst_56 {dimension_numbers = #tpu.dot_dimension_numbers<[1], [0], [0], [1], [0, 0, 1, 1], [], []>} : vector<16x128xf32>, vector<128x32xf32>, vector<16x32xf32> -> vector<16x32xf32>
    %131 = vector.broadcast %5 : vector<1x32xf32> to vector<16x32xf32>
    %132 = arith.addf %130, %131 : vector<16x32xf32>
    %133 = arith.addf %64, %132 : vector<16x32xf32>
    %c0_57 = arith.constant 0 : index
    %c0_58 = arith.constant 0 : index
    %134 = vector.load %arg6[%c0_57, %c0_58] : memref<16x32xf32, #tpu.memory_space<vmem>>, vector<16x32xf32>
    tpu.vector_store %arg6[%c0_57, %c0_58], %133 {strides = array<i32>} : memref<16x32xf32, #tpu.memory_space<vmem>>, vector<16x32xf32>,
    return
  }
  func.func @transform_0(%arg0: i32) -> (i32, i32) {
    %c0_i32 = arith.constant 0 : i32
    %c0_i32_0 = arith.constant 0 : i32
    %c0_i32_1 = arith.constant 0 : i32
    return %c0_i32, %c0_i32_0 : i32, i32
  }
  func.func @transform_1(%arg0: i32) -> (i32, i32) {
    %c0_i32 = arith.constant 0 : i32
    %c0_i32_0 = arith.constant 0 : i32
    %c0_i32_1 = arith.constant 0 : i32
    return %c0_i32, %c0_i32_0 : i32, i32
  }
  func.func @transform_2(%arg0: i32) -> (i32, i32) {
    %c0_i32 = arith.constant 0 : i32
    %c0_i32_0 = arith.constant 0 : i32
    %c0_i32_1 = arith.constant 0 : i32
    return %c0_i32, %c0_i32_0 : i32, i32
  }
  func.func @transform_3(%arg0: i32) -> (i32, i32) {
    %c0_i32 = arith.constant 0 : i32
    %c0_i32_0 = arith.constant 0 : i32
    %c0_i32_1 = arith.constant 0 : i32
    return %c0_i32, %c0_i32_0 : i32, i32
  }
  func.func @transform_4(%arg0: i32) -> (i32, i32) {
    %c0_i32 = arith.constant 0 : i32
    %c0_i32_0 = arith.constant 0 : i32
    %c0_i32_1 = arith.constant 0 : i32
    return %c0_i32, %c0_i32_0 : i32, i32
  }
  func.func @transform_5(%arg0: i32) -> (i32, i32) {
    %c0_i32 = arith.constant 0 : i32
    %c0_i32_0 = arith.constant 0 : i32
    %c0_i32_1 = arith.constant 0 : i32
    return %c0_i32, %c0_i32_0 : i32, i32
  }
}

</mosaic_0001>

<llo_original>
// kernel: tpu_custom_call.1
$region0: #{tpu_custom_call.1}
  #allocation0 [shape = 'u32[]', space=smem, size = 0x4, offset = 0x4, fixed_abs, tag = 'smem constant byte address 0x4 - core index']
  #allocation1 [shape = 'u32[144,128]{1,0:T(1,128)}', space=vmem, size = 0x12000, scoped, tag = 'internal scratch']
  #allocation2 [shape = 'f32[16,96]{1,0:T(8,128)}', space=vmem, size = 0x2000, scoped, tag = 'scratch operand']
  %s0 = inlined_call_operand.vmem [shape: f32[16,32], index: 0, kind: input, shape index: {}]
  %s1 = inlined_call_operand.vmem [shape: f32[8,128], index: 1, kind: input, shape index: {}]
  %s2 = inlined_call_operand.vmem [shape: f32[96,32], index: 2, kind: input, shape index: {}]
  %s3 = inlined_call_operand.vmem [shape: f32[32,128], index: 3, kind: input, shape index: {}]
  %s4 = inlined_call_operand.vmem [shape: f32[128,32], index: 4, kind: input, shape index: {}]
  %s5 = inlined_call_operand.hbm [shape: f32[16,32], index: 5, kind: output, shape index: {}]
  %s6 = sld [smem:[#allocation0]]
  $region30: #{tpu_custom_call.1} parent=0
    _
  %s8 = ssub.s32 1, %s6
  %s9 = scalar_select 0, %s8, %s6
  $region1: #{tpu_custom_call.1} parent=0
    #allocation3 [shape = 'u8[8192]{0}', space=vmem, size = 0x2000, scoped, tag = 'output window, operand 0, single buffered']
    #allocation4 [shape = 's32[1]{0}', space=sflag, size = 0x4, scoped, tag = 'scoped memory for tpu_custom_call.1']
    %10 = vsyncpa [#allocation4], 0
    // Predicated region
    $region2: #{tpu_custom_call.1} parent=1 // pred_check
      _
    $region3: #{tpu_custom_call.1} parent=1 // pred_check_branch
      %12 = sbr.rel (0) target = $region5
    $region4: #{tpu_custom_call.1} parent=1 // pred_region
      _
    $region5: #{tpu_custom_call.1} parent=1 // pred_fallthru
      _
    // Predicated region
    $region6: #{tpu_custom_call.1} parent=1 // pred_check
      _
    $region7: #{tpu_custom_call.1} parent=1 // pred_check_branch
      %14 = sbr.rel (0) target = $region9
    $region8: #{tpu_custom_call.1} parent=1 // pred_region
      _
    $region9: #{tpu_custom_call.1} parent=1 // pred_fallthru
      _
    // Predicated region
    $region10: #{tpu_custom_call.1} parent=1 // pred_check
      _
    $region11: #{tpu_custom_call.1} parent=1 // pred_check_branch
      %16 = sbr.rel (0) target = $region13
    $region12: #{tpu_custom_call.1} parent=1 // pred_region
      _
    $region13: #{tpu_custom_call.1} parent=1 // pred_fallthru
      _
    // Predicated region
    $region14: #{tpu_custom_call.1} parent=1 // pred_check
      _
    $region15: #{tpu_custom_call.1} parent=1 // pred_check_branch
      %18 = sbr.rel (0) target = $region17
    $region16: #{tpu_custom_call.1} parent=1 // pred_region
      _
    $region17: #{tpu_custom_call.1} parent=1 // pred_fallthru
      _
    // Predicated region
    $region18: #{tpu_custom_call.1} parent=1 // pred_check
      _
    $region19: #{tpu_custom_call.1} parent=1 // pred_check_branch
      %20 = sbr.rel (0) target = $region21
    $region20: #{tpu_custom_call.1} parent=1 // pred_region
      _
    $region21: #{tpu_custom_call.1} parent=1 // pred_fallthru
      _
    %v21 = vld [vmem:[%s1] sm:$0x1]
    %v22 = vld [vmem:[%s1 + $0x1] sm:$0x1]
    %v23 = vld [vmem:[%s1 + $0x2] sm:$0x1]
    %v24 = vld [vmem:[%s1 + $0x3] sm:$0x1]
    %v25 = vld [vmem:[%s1 + $0x4] sm:$0x1]
    %v26 = vld [vmem:[%s1 + $0x5] sm:$0x1]
    %v27 = vld [vmem:[%s1 + $0x6] sm:$0x1]
    %v28 = vld [vmem:[%s0] sm:$0xff]
    %v29 = vld [vmem:[%s0 + $0x8] sm:$0xff]
    %vm30 = vcmask 261120
    %v31 = vsel %vm30, %v28, 0.0
    %32 = vadd.xlane.f32.xlu0 %v31
    %v33 = vpop.xlane.xlu0 %32
    %v34 = vsel %vm30, %v29, 0.0
    %35 = vadd.xlane.f32.xlu0 %v34
    %v36 = vpop.xlane.xlu0 %35
    %v37 = vrcp.pop 32.0
    %v38 = vmul.f32 %v33, %v37
    %v39 = vmul.f32 %v36, %v37
    %v40 = vsub.f32 %v28, %v38
    %v41 = vsub.f32 %v29, %v39
    %v42 = vmul.f32 %v40, %v40
    %v43 = vmul.f32 %v41, %v41
    %v44 = vsel %vm30, %v42, 0.0
    %45 = vadd.xlane.f32.xlu0 %v44
    %v46 = vpop.xlane.xlu0 %45
    %v47 = vsel %vm30, %v43, 0.0
    %48 = vadd.xlane.f32.xlu0 %v47
    %v49 = vpop.xlane.xlu0 %48
    %v50 = vmul.f32 %v46, %v37
    %v51 = vmul.f32 %v49, %v37
    %v52 = vadd.f32 %v50, 1e-05
    %v53 = vadd.f32 %v51, 1e-05
    %v54 = vrsqrt.pop %v52
    %v55 = vrsqrt.pop %v53
    %v56 = vmul.f32 %v40, %v54
    %v57 = vmul.f32 %v41, %v55
    %v58 = vlaneseq
    %v59 = vshrl.u32 %v58, 7
    %v60 = vsub.s32 0, %v59
    %v61 = vrot.slane %v21, %v60
    %v62 = vmul.f32 %v56, %v61
    %v63 = vmul.f32 %v57, %v61
    %v64 = vlaneseq
    %v65 = vshrl.u32 %v64, 7
    %v66 = vsub.s32 0, %v65
    %v67 = vrot.slane %v22, %v66
    %v68 = vadd.f32 %v62, %v67
    %v69 = vadd.f32 %v63, %v67
    %70 = vst.msk [vmem:[#allocation2] sm:$0xff] %vm30, %v68
    %71 = vst.msk [vmem:[#allocation2 + $0x8] sm:$0xff] %vm30, %v69
    %v72 = vlaneseq
    %v73 = vshrl.u32 %v72, 7
    %v74 = vadd.s32 %v73, 8
    %vm75 = vcmp.lt.s32.totalorder %v73, 0
    %v76 = vsub.s32 0, %v73
    %v77 = vsel %vm75, %v76, %v73
    %v78 = vshrl.u32 %v77, 3
    %v79 = vand.u32 %v77, 7
    %v80 = vsub.s32 0, %v79
    %v81 = vsel %vm75, %v80, %v79
    %vm82 = vcmp.lt.s32.totalorder %v74, 0
    %v83 = vsub.s32 0, %v74
    %v84 = vsel %vm82, %v83, %v74
    %v85 = vshrl.u32 %v84, 3
    %v86 = vand.u32 %v84, 7
    %v87 = vsub.s32 0, %v86
    %v88 = vsel %vm82, %v87, %v86
    %vm89 = vcmp.ne.s32.totalorder %v81, 0
    %vm90 = vcmp.ne.s32.totalorder %v88, 0
    %vm91 = vcmp.lt.s32.totalorder %v81, 0
    %vm92 = vcmp.lt.s32.totalorder %v88, 0
    %vm93 = vmand %vm91, %vm89
    %vm94 = vmand %vm92, %vm90
    %v95 = vadd.s32 %v81, 8
    %v96 = vadd.s32 %v88, 8
    %v97 = vsel %vm93, %v95, %v81
    %v98 = vsel %vm94, %v96, %v88
    %v99 = vrot.slane %v68, 7
    %v100 = vrot.slane %v69, 7
    %vm101 = vcmp.lt.s32.totalorder %v73, 1
    %v102 = vsel %vm101, %v99, %v100
    %v103 = vsel %vm101, %v100, %v99
    %vm104 = vcmp.ge.s32.totalorder %v97, 1
    %vm105 = vcmp.ge.s32.totalorder %v98, 1
    %v106 = vsel %vm104, %v103, 0.0
    %v107 = vsel %vm105, %v102, 0.0
    %110 = vrot.lane.b32.xlu0 %v106, 32
    %v111 = vpop.permute.xlu0 %110
    %112 = vrot.lane.b32.xlu0 %v107, 32
    %v113 = vpop.permute.xlu0 %112
    %vm116 = vcmask 523520
    %117 = vst.msk [vmem:[#allocation2] sm:$0xff] %vm116, %v111
    %118 = vst.msk [vmem:[#allocation2 + $0x8] sm:$0xff] %vm116, %v113
    %v119 = vrot.slane %v68, 6
    %v120 = vrot.slane %v69, 6
    %vm121 = vcmp.lt.s32.totalorder %v73, 2
    %v122 = vsel %vm121, %v119, %v120
    %v123 = vsel %vm121, %v120, %v119
    %vm124 = vcmp.ge.s32.totalorder %v97, 2
    %vm125 = vcmp.ge.s32.totalorder %v98, 2
    %v126 = vsel %vm124, %v123, 0.0
    %v127 = vsel %vm125, %v122, 0.0
    %130 = vrot.lane.b32.xlu0 %v126, 64
    %v131 = vpop.permute.xlu0 %130
    %132 = vrot.lane.b32.xlu0 %v127, 64
    %v133 = vpop.permute.xlu0 %132
    %vm136 = vcmask 785920
    %137 = vst.msk [vmem:[#allocation2] sm:$0xff] %vm136, %v131
    %138 = vst.msk [vmem:[#allocation2 + $0x8] sm:$0xff] %vm136, %v133
    %v139 = vld [vmem:[#allocation2] sm:$0xff]
    %v140 = vld [vmem:[#allocation2 + $0x8] sm:$0xff]
    %v141 = vld [vmem:[%s2] sm:$0xff]
    %v142 = vld [vmem:[%s2 + $0x8] sm:$0xff]
    %v143 = vld [vmem:[%s2 + $0x10] sm:$0xff]
    %v144 = vld [vmem:[%s2 + $0x18] sm:$0xff]
    %v145 = vld [vmem:[%s2 + $0x20] sm:$0xff]
    %v146 = vld [vmem:[%s2 + $0x28] sm:$0xff]
    %v147 = vld [vmem:[%s2 + $0x30] sm:$0xff]
    %v148 = vld [vmem:[%s2 + $0x38] sm:$0xff]
    %v149 = vld [vmem:[%s2 + $0x40] sm:$0xff]
    %v150 = vld [vmem:[%s2 + $0x48] sm:$0xff]
    %v151 = vld [vmem:[%s2 + $0x50] sm:$0xff]
    %v152 = vld [vmem:[%s2 + $0x58] sm:$0xff]
    %v153 = vlaneseq
    %v154 = vshrl.u32 %v153, 7
    %v155 = vsub.s32 0, %v154
    %v156 = vrot.slane %v25, %v155
    %vm157 = vcmask 785408
    %v159 = vsel %vm157, %v139, 0
    %v162 = vsel %vm157, %v140, 0
    %164 = vmatprep.subr.mxu0 0.0
    %165 = vmatpush1.msra.mxu0 0.0
    %166 = vmatprep.subr.mxu0 0.0
    %167 = vmatpush1.msra.mxu0 0.0
    %168 = vmatprep.subr.mxu0 0.0
    %169 = vmatpush1.msra.mxu0 0.0
    %170 = vmatprep.subr.mxu0 0.0
    %171 = vmatpush1.msra.mxu0 0.0
    %172 = vmatprep.subr.mxu0 0.0
    %173 = vmatpush1.msra.mxu0 %v152
    %174 = vmatprep.subr.mxu0 0.0
    %175 = vmatpush1.msra.mxu0 %v151
    %176 = vmatprep.subr.mxu0 0.0
    %177 = vmatpush1.msra.mxu0 %v150
    %178 = vmatprep.subr.mxu0 0.0
    %179 = vmatpush1.msra.mxu0 %v149
    %180 = vmatprep.subr.mxu0 0.0
    %181 = vmatpush1.msra.mxu0 %v148
    %182 = vmatprep.subr.mxu0 0.0
    %183 = vmatpush1.msra.mxu0 %v147
    %184 = vmatprep.subr.mxu0 0.0
    %185 = vmatpush1.msra.mxu0 %v146
    %186 = vmatprep.subr.mxu0 0.0
    %187 = vmatpush1.msra.mxu0 %v145
    %188 = vmatprep.subr.mxu0 0.0
    %189 = vmatpush1.msra.mxu0 %v144
    %190 = vmatprep.subr.mxu0 0.0
    %191 = vmatpush1.msra.mxu0 %v143
    %192 = vmatprep.subr.mxu0 0.0
    %193 = vmatpush1.msra.mxu0 %v142
    %194 = vmatprep.subr.mxu0 0.0
    %195 = vmatpush1.msra.mxu0 %v141
    %196 = vmatprep.subr.mxu0 0.0
    %197 = vmatpush2.msra.mxu0 0.0
    %198 = vmatprep.subr.mxu0 0.0
    %199 = vmatpush2.msra.mxu0 0.0
    %200 = vmatprep.subr.mxu0 0.0
    %201 = vmatpush2.msra.mxu0 0.0
    %202 = vmatprep.subr.mxu0 0.0
    %203 = vmatpush2.msra.mxu0 0.0
    %204 = vmatprep.subr.mxu0 0.0
    %205 = vmatpush2.msra.mxu0 0.0
    %206 = vmatprep.subr.mxu0 0.0
    %207 = vmatpush2.msra.mxu0 0.0
    %208 = vmatprep.subr.mxu0 0.0
    %209 = vmatpush2.msra.mxu0 0.0
    %210 = vmatprep.subr.mxu0 0.0
    %211 = vmatpush2.msra.mxu0 0.0
    %212 = vmatprep.subr.mxu0 0.0
    %213 = vmatpush2.msra.mxu0 0.0
    %214 = vmatprep.subr.mxu0 0.0
    %215 = vmatpush2.msra.mxu0 0.0
    %216 = vmatprep.subr.mxu0 0.0
    %217 = vmatpush2.msra.mxu0 0.0
    %218 = vmatprep.subr.mxu0 0.0
    %219 = vmatpush2.msra.mxu0 0.0
    %220 = vmatprep.subr.mxu0 0.0
    %221 = vmatpush2.msra.mxu0 0.0
    %222 = vmatprep.subr.mxu0 0.0
    %223 = vmatpush2.msra.mxu0 0.0
    %224 = vmatprep.subr.mxu0 0.0
    %225 = vmatpush2.msra.mxu0 0.0
    %226 = vmatprep.subr.mxu0 0.0
    %227 = vmatpush2.msra.mxu0 0.0
    %228 = vmatprep.mubr.f32.mxu0 0.0
    %229 = vmatmul.mubr.f32.gmra.mxu0 %v159
    %v230 = vpop.f32.mrf.mxu0
    %v231 = vadd.f32 %v156, %v230
    %v232 = vpop.f32.mrf.mxu0
    %233 = vmatprep.mubr.f32.mxu0 0.0
    %234 = vmatmul.mubr.f32.gmra.mxu0 %v162
    %v235 = vpop.f32.mrf.mxu0
    %v236 = vadd.f32 %v156, %v235
    %v237 = vpop.f32.mrf.mxu0
    %238 = vdwg.mxu0
    %v239 = vmax.f32 %v231, 0.0
    %v240 = vmax.f32 %v236, 0.0
    %v241 = vsel %vm30, %v239, 0.0
    %242 = vadd.xlane.f32.xlu0 %v241
    %v243 = vpop.xlane.xlu0 %242
    %v244 = vsel %vm30, %v240, 0.0
    %245 = vadd.xlane.f32.xlu0 %v244
    %v246 = vpop.xlane.xlu0 %245
    %v247 = vmul.f32 %v243, %v37
    %v248 = vmul.f32 %v246, %v37
    %v249 = vsub.f32 %v239, %v247
    %v250 = vsub.f32 %v240, %v248
    %v251 = vmul.f32 %v249, %v249
    %v252 = vmul.f32 %v250, %v250
    %v253 = vsel %vm30, %v251, 0.0
    %254 = vadd.xlane.f32.xlu0 %v253
    %v255 = vpop.xlane.xlu0 %254
    %v256 = vsel %vm30, %v252, 0.0
    %257 = vadd.xlane.f32.xlu0 %v256
    %v258 = vpop.xlane.xlu0 %257
    %v259 = vmul.f32 %v255, %v37
    %v260 = vmul.f32 %v258, %v37
    %v261 = vadd.f32 %v259, 1e-05
    %v262 = vadd.f32 %v260, 1e-05
    %v263 = vrsqrt.pop %v261
    %v264 = vrsqrt.pop %v262
    %v265 = vmul.f32 %v249, %v263
    %v266 = vmul.f32 %v250, %v264
    %v267 = vlaneseq
    %v268 = vshrl.u32 %v267, 7
    %v269 = vsub.s32 0, %v268
    %v270 = vrot.slane %v23, %v269
    %v271 = vmul.f32 %v265, %v270
    %v272 = vmul.f32 %v266, %v270
    %v273 = vlaneseq
    %v274 = vshrl.u32 %v273, 7
    %v275 = vsub.s32 0, %v274
    %v276 = vrot.slane %v24, %v275
    %v277 = vadd.f32 %v271, %v276
    %v278 = vadd.f32 %v272, %v276
    %v279 = vld [vmem:[%s3] sm:$0xff]
    %v280 = vld [vmem:[%s3 + $0x8] sm:$0xff]
    %v281 = vld [vmem:[%s3 + $0x10] sm:$0xff]
    %v282 = vld [vmem:[%s3 + $0x18] sm:$0xff]
    %v283 = vlaneseq
    %v284 = vshrl.u32 %v283, 7
    %v285 = vsub.s32 0, %v284
    %v286 = vrot.slane %v27, %v285
    %v288 = vsel %vm30, %v277, 0
    %v291 = vsel %vm30, %v278, 0
    %293 = vmatprep.subr.mxu0 0.0
    %294 = vmatpush1.msra.mxu0 0.0
    %295 = vmatprep.subr.mxu0 0.0
    %296 = vmatpush1.msra.mxu0 0.0
    %297 = vmatprep.subr.mxu0 0.0
    %298 = vmatpush1.msra.mxu0 0.0
    %299 = vmatprep.subr.mxu0 0.0
    %300 = vmatpush1.msra.mxu0 0.0
    %301 = vmatprep.subr.mxu0 0.0
    %302 = vmatpush1.msra.mxu0 0.0
    %303 = vmatprep.subr.mxu0 0.0
    %304 = vmatpush1.msra.mxu0 0.0
    %305 = vmatprep.subr.mxu0 0.0
    %306 = vmatpush1.msra.mxu0 0.0
    %307 = vmatprep.subr.mxu0 0.0
    %308 = vmatpush1.msra.mxu0 0.0
    %309 = vmatprep.subr.mxu0 0.0
    %310 = vmatpush1.msra.mxu0 0.0
    %311 = vmatprep.subr.mxu0 0.0
    %312 = vmatpush1.msra.mxu0 0.0
    %313 = vmatprep.subr.mxu0 0.0
    %314 = vmatpush1.msra.mxu0 0.0
    %315 = vmatprep.subr.mxu0 0.0
    %316 = vmatpush1.msra.mxu0 0.0
    %317 = vmatprep.subr.mxu0 0.0
    %318 = vmatpush1.msra.mxu0 %v282
    %319 = vmatprep.subr.mxu0 0.0
    %320 = vmatpush1.msra.mxu0 %v281
    %321 = vmatprep.subr.mxu0 0.0
    %322 = vmatpush1.msra.mxu0 %v280
    %323 = vmatprep.subr.mxu0 0.0
    %324 = vmatpush1.msra.mxu0 %v279
    %325 = vmatprep.subr.mxu0 0.0
    %326 = vmatpush2.msra.mxu0 0.0
    %327 = vmatprep.subr.mxu0 0.0
    %328 = vmatpush2.msra.mxu0 0.0
    %329 = vmatprep.subr.mxu0 0.0
    %330 = vmatpush2.msra.mxu0 0.0
    %331 = vmatprep.subr.mxu0 0.0
    %332 = vmatpush2.msra.mxu0 0.0
    %333 = vmatprep.subr.mxu0 0.0
    %334 = vmatpush2.msra.mxu0 0.0
    %335 = vmatprep.subr.mxu0 0.0
    %336 = vmatpush2.msra.mxu0 0.0
    %337 = vmatprep.subr.mxu0 0.0
    %338 = vmatpush2.msra.mxu0 0.0
    %339 = vmatprep.subr.mxu0 0.0
    %340 = vmatpush2.msra.mxu0 0.0
    %341 = vmatprep.subr.mxu0 0.0
    %342 = vmatpush2.msra.mxu0 0.0
    %343 = vmatprep.subr.mxu0 0.0
    %344 = vmatpush2.msra.mxu0 0.0
    %345 = vmatprep.subr.mxu0 0.0
    %346 = vmatpush2.msra.mxu0 0.0
    %347 = vmatprep.subr.mxu0 0.0
    %348 = vmatpush2.msra.mxu0 0.0
    %349 = vmatprep.subr.mxu0 0.0
    %350 = vmatpush2.msra.mxu0 0.0
    %351 = vmatprep.subr.mxu0 0.0
    %352 = vmatpush2.msra.mxu0 0.0
    %353 = vmatprep.subr.mxu0 0.0
    %354 = vmatpush2.msra.mxu0 0.0
    %355 = vmatprep.subr.mxu0 0.0
    %356 = vmatpush2.msra.mxu0 0.0
    %357 = vmatprep.mubr.f32.mxu0 0.0
    %358 = vmatmul.mubr.f32.gmra.mxu0 %v288
    %v359 = vpop.f32.mrf.mxu0
    %v360 = vadd.f32 %v286, %v359
    %v361 = vpop.f32.mrf.mxu0
    %362 = vmatprep.mubr.f32.mxu0 0.0
    %363 = vmatmul.mubr.f32.gmra.mxu0 %v291
    %v364 = vpop.f32.mrf.mxu0
    %v365 = vadd.f32 %v286, %v364
    %v366 = vpop.f32.mrf.mxu0
    %367 = vdwg.mxu0
    %v368 = vmul.f32 %v360, 0.70710677
    %v369 = vmul.f32 %v365, 0.70710677
    %v370 = vand.u32 2147483647, %v368
    %v371 = vand.u32 2147483647, %v369
    %v372 = vmul.f32 %v370, 0.3275911
    %v373 = vmul.f32 %v371, 0.3275911
    %v374 = vadd.f32 %v372, 1.0
    %v375 = vadd.f32 %v373, 1.0
    %v376 = vrcp.pop %v374
    %v377 = vmul.f32 1.0, %v376
    %v378 = vrcp.pop %v375
    %v379 = vmul.f32 1.0, %v378
    %v380 = vmul.f32 %v377, 1.0614054
    %v381 = vmul.f32 %v379, 1.0614054
    %v382 = vsub.f32 %v380, 1.4531521
    %v383 = vsub.f32 %v381, 1.4531521
    %v384 = vmul.f32 %v382, %v377
    %v385 = vmul.f32 %v383, %v379
    %v386 = vadd.f32 %v384, 1.4214138
    %v387 = vadd.f32 %v385, 1.4214138
    %v388 = vmul.f32 %v386, %v377
    %v389 = vmul.f32 %v387, %v379
    %v390 = vsub.f32 %v388, 0.28449672
    %v391 = vsub.f32 %v389, 0.28449672
    %v392 = vmul.f32 %v390, %v377
    %v393 = vmul.f32 %v391, %v379
    %v394 = vadd.f32 %v392, 0.2548296
    %v395 = vadd.f32 %v393, 0.2548296
    %v396 = vmul.f32 %v394, %v377
    %v397 = vmul.f32 %v395, %v379
    %v398 = vsub.f32 0.0, %v370
    %v399 = vsub.f32 0.0, %v371
    %v400 = vmul.f32 %v398, %v370
    %v401 = vmul.f32 %v399, %v371
    %v402 = vmul.f32 %v400, 1.442695
    %v403 = vpow.pop %v402
    %v404 = vmul.f32 %v401, 1.442695
    %v405 = vpow.pop %v404
    %v406 = vmul.f32 %v396, %v403
    %v407 = vmul.f32 %v397, %v405
    %v408 = vsub.f32 1.0, %v406
    %v409 = vsub.f32 1.0, %v407
    %vm410 = vcmp.lt.f32.partialorder %v368, 0.0
    %vm411 = vcmp.lt.f32.partialorder %v369, 0.0
    %v412 = vsub.f32 0.0, %v408
    %v413 = vsub.f32 0.0, %v409
    %v414 = vsel %vm410, %v412, %v408
    %v415 = vsel %vm411, %v413, %v409
    %v416 = vmul.f32 %v360, 0.5
    %v417 = vmul.f32 %v365, 0.5
    %v418 = vadd.f32 %v414, 1.0
    %v419 = vadd.f32 %v415, 1.0
    %v420 = vmul.f32 %v416, %v418
    %v421 = vmul.f32 %v417, %v419
    %v422 = vld [vmem:[%s4] sm:$0xff]
    %v423 = vld [vmem:[%s4 + $0x8] sm:$0xff]
    %v424 = vld [vmem:[%s4 + $0x10] sm:$0xff]
    %v425 = vld [vmem:[%s4 + $0x18] sm:$0xff]
    %v426 = vld [vmem:[%s4 + $0x20] sm:$0xff]
    %v427 = vld [vmem:[%s4 + $0x28] sm:$0xff]
    %v428 = vld [vmem:[%s4 + $0x30] sm:$0xff]
    %v429 = vld [vmem:[%s4 + $0x38] sm:$0xff]
    %v430 = vld [vmem:[%s4 + $0x40] sm:$0xff]
    %v431 = vld [vmem:[%s4 + $0x48] sm:$0xff]
    %v432 = vld [vmem:[%s4 + $0x50] sm:$0xff]
    %v433 = vld [vmem:[%s4 + $0x58] sm:$0xff]
    %v434 = vld [vmem:[%s4 + $0x60] sm:$0xff]
    %v435 = vld [vmem:[%s4 + $0x68] sm:$0xff]
    %v436 = vld [vmem:[%s4 + $0x70] sm:$0xff]
    %v437 = vld [vmem:[%s4 + $0x78] sm:$0xff]
    %v438 = vlaneseq
    %v439 = vshrl.u32 %v438, 7
    %v440 = vsub.s32 0, %v439
    %v441 = vrot.slane %v26, %v440
    %442 = vmatprep.subr.mxu0 0.0
    %443 = vmatpush1.msra.mxu0 %v437
    %444 = vmatprep.subr.mxu0 0.0
    %445 = vmatpush1.msra.mxu0 %v436
    %446 = vmatprep.subr.mxu0 0.0
    %447 = vmatpush1.msra.mxu0 %v435
    %448 = vmatprep.subr.mxu0 0.0
    %449 = vmatpush1.msra.mxu0 %v434
    %450 = vmatprep.subr.mxu0 0.0
    %451 = vmatpush1.msra.mxu0 %v433
    %452 = vmatprep.subr.mxu0 0.0
    %453 = vmatpush1.msra.mxu0 %v432
    %454 = vmatprep.subr.mxu0 0.0
    %455 = vmatpush1.msra.mxu0 %v431
    %456 = vmatprep.subr.mxu0 0.0
    %457 = vmatpush1.msra.mxu0 %v430
    %458 = vmatprep.subr.mxu0 0.0
    %459 = vmatpush1.msra.mxu0 %v429
    %460 = vmatprep.subr.mxu0 0.0
    %461 = vmatpush1.msra.mxu0 %v428
    %462 = vmatprep.subr.mxu0 0.0
    %463 = vmatpush1.msra.mxu0 %v427
    %464 = vmatprep.subr.mxu0 0.0
    %465 = vmatpush1.msra.mxu0 %v426
    %466 = vmatprep.subr.mxu0 0.0
    %467 = vmatpush1.msra.mxu0 %v425
    %468 = vmatprep.subr.mxu0 0.0
    %469 = vmatpush1.msra.mxu0 %v424
    %470 = vmatprep.subr.mxu0 0.0
    %471 = vmatpush1.msra.mxu0 %v423
    %472 = vmatprep.subr.mxu0 0.0
    %473 = vmatpush1.msra.mxu0 %v422
    %474 = vmatprep.subr.mxu0 0.0
    %475 = vmatpush2.msra.mxu0 0.0
    %476 = vmatprep.subr.mxu0 0.0
    %477 = vmatpush2.msra.mxu0 0.0
    %478 = vmatprep.subr.mxu0 0.0
    %479 = vmatpush2.msra.mxu0 0.0
    %480 = vmatprep.subr.mxu0 0.0
    %481 = vmatpush2.msra.mxu0 0.0
    %482 = vmatprep.subr.mxu0 0.0
    %483 = vmatpush2.msra.mxu0 0.0
    %484 = vmatprep.subr.mxu0 0.0
    %485 = vmatpush2.msra.mxu0 0.0
    %486 = vmatprep.subr.mxu0 0.0
    %487 = vmatpush2.msra.mxu0 0.0
    %488 = vmatprep.subr.mxu0 0.0
    %489 = vmatpush2.msra.mxu0 0.0
    %490 = vmatprep.subr.mxu0 0.0
    %491 = vmatpush2.msra.mxu0 0.0
    %492 = vmatprep.subr.mxu0 0.0
    %493 = vmatpush2.msra.mxu0 0.0
    %494 = vmatprep.subr.mxu0 0.0
    %495 = vmatpush2.msra.mxu0 0.0
    %496 = vmatprep.subr.mxu0 0.0
    %497 = vmatpush2.msra.mxu0 0.0
    %498 = vmatprep.subr.mxu0 0.0
    %499 = vmatpush2.msra.mxu0 0.0
    %500 = vmatprep.subr.mxu0 0.0
    %501 = vmatpush2.msra.mxu0 0.0
    %502 = vmatprep.subr.mxu0 0.0
    %503 = vmatpush2.msra.mxu0 0.0
    %504 = vmatprep.subr.mxu0 0.0
    %505 = vmatpush2.msra.mxu0 0.0
    %506 = vmatprep.mubr.f32.mxu0 0.0
    %507 = vmatmul.mubr.f32.gmra.mxu0 %v420
    %v508 = vpop.f32.mrf.mxu0
    %v509 = vadd.f32 %v441, %v508
    %v510 = vpop.f32.mrf.mxu0
    %511 = vmatprep.mubr.f32.mxu0 0.0
    %512 = vmatmul.mubr.f32.gmra.mxu0 %v421
    %v513 = vpop.f32.mrf.mxu0
    %v514 = vadd.f32 %v441, %v513
    %v515 = vpop.f32.mrf.mxu0
    %516 = vdwg.mxu0
    %v517 = vadd.f32 %v239, %v509
    %v518 = vadd.f32 %v240, %v514
    %519 = vst.msk [vmem:[#allocation3] sm:$0xff] %vm30, %v517
    %520 = vst.msk [vmem:[#allocation3 + $0x8] sm:$0xff] %vm30, %v518
    // Predicated region
    $region22: #{tpu_custom_call.1} parent=1 // pred_check
      _
    $region23: #{tpu_custom_call.1} parent=1 // pred_check_branch
      %522 = sbr.rel (0) target = $region25
    $region24: #{tpu_custom_call.1} parent=1 // pred_region
      %s524 = ssub.s32 256, 256
      %525 = vsyncadd [#allocation4], %s524
      %s526 = sshll.u32 [#allocation3], 4
      %s527 = int_to_ptr.vmem [resolvable:$true] %s526
      %532 = dma.vmem_to_hbm [thread:$0]  %s527, 256, %s5, [#allocation4], 128, 128, 8
    $region25: #{tpu_custom_call.1} parent=1 // pred_fallthru
      _
    // Predicated region
    $region26: #{tpu_custom_call.1} parent=1 // pred_check
      _
    $region27: #{tpu_custom_call.1} parent=1 // pred_check_branch
      %534 = sbr.rel (0) target = $region29
    $region28: #{tpu_custom_call.1} parent=1 // pred_region
      %535 = dma.done [#allocation4], 256
    $region29: #{tpu_custom_call.1} parent=1 // pred_fallthru
      _
    %536 = vsyncpa [#allocation4], 1

</llo_original>
